<compile_context>
chip_gen: v5e
topology: v5e:2x2
jax: 0.10.0
libtpu: 0.0.40
codegen_flags: <defaults>
</compile_context>

<pallas_src>
import functools
import math

import jax
import jax.numpy as jnp
from jax.experimental import pallas as pl
from jax.experimental.pallas import tpu as pltpu


# ---------------------------------------------------------------------------
# GELU (tanh approximation), computed in f32 on the accumulator tile.
# ---------------------------------------------------------------------------
_GELU_C = math.sqrt(2.0 / math.pi)


def _gelu_tanh(x):
    return 0.5 * x * (1.0 + jnp.tanh(_GELU_C * (x + 0.044715 * x * x * x)))


# ---------------------------------------------------------------------------
# Kernels
# ---------------------------------------------------------------------------
def _linear_fullk_kernel(x_ref, w_ref, b_ref, o_ref, *, apply_gelu):
    """Full-K panel kernel: out = act(x @ W + b) for one (tm, tn) output tile."""
    out = jnp.dot(x_ref[...], w_ref[...], preferred_element_type=jnp.float32)
    out = out + b_ref[...].astype(jnp.float32)
    if apply_gelu:
        out = _gelu_tanh(out)
    o_ref[...] = out.astype(o_ref.dtype)


def _linear_tiled_k_kernel(x_ref, w_ref, b_ref, o_ref, acc_ref, *, apply_gelu):
    """K-tiled kernel with f32 VMEM accumulator; grid = (M/tm, N/tn, K/tk)."""
    k = pl.program_id(2)

    @pl.when(k == 0)
    def _init():
        acc_ref[...] = jnp.zeros_like(acc_ref)

    acc_ref[...] += jnp.dot(
        x_ref[...], w_ref[...], preferred_element_type=jnp.float32
    )

    @pl.when(k == pl.num_programs(2) - 1)
    def _finalize():
        out = acc_ref[...] + b_ref[...].astype(jnp.float32)
        if apply_gelu:
            out = _gelu_tanh(out)
        o_ref[...] = out.astype(o_ref.dtype)


# ---------------------------------------------------------------------------
# Tiling / VMEM helpers
# ---------------------------------------------------------------------------
def _sublane_granule(dtype):
    itemsize = jnp.dtype(dtype).itemsize
    if itemsize >= 4:
        return 8
    if itemsize == 2:
        return 16
    return 32


def _pick_tile(dim, target, granule):
    """Largest granule-aligned tile <= target that evenly divides dim; falls
    back to the full dimension (full-extent blocks satisfy the (8,128) rule)."""
    if dim <= target:
        return dim
    t = (target // granule) * granule
    while t >= granule:
        if dim % t == 0:
            return t
        t -= granule
    # TODO(synk): no masked/partial-tile path; awkward dims fall back to the
    # full extent (correct, but can enlarge the VMEM footprint).
    return dim


def _ensure_multiple_blocks(dim, tile, granule):
    """Prefer >=2 blocks along the M axis so v7x's two TensorCores both work."""
    if tile == dim and dim % (2 * granule) == 0:
        return dim // 2
    return tile


def _vmem_budget_bytes():
    try:
        cap = int(pltpu.get_tpu_info().vmem_capacity_bytes)
    except Exception:
        cap = 64 * 1024 * 1024  # conservative: v7x per-TensorCore VMEM
    return (cap * 3) // 4       # ~25% headroom for compiler-internal scratch


# ---------------------------------------------------------------------------
# Fused linear: out = act(x2d @ w + b)
# ---------------------------------------------------------------------------
def linear(x2d, w, b, *, apply_gelu=False, tm=512, tn=512, tk=512):
    """x2d: (M, K), w: (K, N), b: (N,) -> (M, N)."""
    M, K = x2d.shape
    K2, N = w.shape
    assert K == K2, (K, K2)

    in_dtype = x2d.dtype
    in_size = jnp.dtype(in_dtype).itemsize
    out_size = in_size
    sub_g = _sublane_granule(in_dtype)
    budget = _vmem_budget_bytes()

    tn = _pick_tile(N, tn, 128)  # lane-dense output tiles
    b2d = b.reshape(1, N).astype(jnp.float32)

    # ---- Path A: full-K, weight-panel-resident ----------------------------
    # Grid ordered (j, i): the W block index (0, j) is constant across i, so
    # Pallas keeps the (K, tn) weight panel resident -> W read from HBM once.
    tm_a = _pick_tile(M, tm, sub_g)
    tm_a = _ensure_multiple_blocks(M, tm_a, sub_g)

    def fullk_bytes(tm_):
        return (2 * (tm_ * K + K * tn + tn) * in_size   # double-buffered inputs
                + 2 * tm_ * tn * out_size)              # double-buffered output

    while fullk_bytes(tm_a) > budget and tm_a % (2 * sub_g) == 0:
        tm_a //= 2

    if fullk_bytes(tm_a) <= budget:
        grid = (N // tn, M // tm_a)
        cost = pl.CostEstimate(
            flops=2 * M * N * K,
            transcendentals=(M * N) if apply_gelu else 0,
            bytes_accessed=int(
                (M * K) * (N // tn) * in_size   # x re-streamed once per W panel
                + K * N * in_size               # W read exactly once (resident)
                + N * 4
                + M * N * out_size
            ),
        )
        kernel = functools.partial(_linear_fullk_kernel, apply_gelu=apply_gelu)
        return pl.pallas_call(
            kernel,
            out_shape=jax.ShapeDtypeStruct((M, N), in_dtype),
            grid_spec=pltpu.PrefetchScalarGridSpec(
                num_scalar_prefetch=0,
                grid=grid,
                in_specs=[
                    pl.BlockSpec((tm_a, K), lambda j, i: (i, 0)),  # x slab
                    pl.BlockSpec((K, tn), lambda j, i: (0, j)),    # W panel (resident over i)
                    pl.BlockSpec((1, tn), lambda j, i: (0, j)),    # bias
                ],
                out_specs=pl.BlockSpec((tm_a, tn), lambda j, i: (i, j)),
            ),
            compiler_params=pltpu.CompilerParams(
                dimension_semantics=("parallel", "parallel"),
                vmem_limit_bytes=int(budget),
            ),
            cost_estimate=cost,
        )(x2d, w, b2d)

    # ---- Path B: K-tiled reduction with f32 VMEM accumulator ---------------
    tm_b = _pick_tile(M, tm, sub_g)
    tm_b = _ensure_multiple_blocks(M, tm_b, sub_g)
    tk_b = _pick_tile(K, tk, 128)
    grid = (M // tm_b, N // tn, K // tk_b)

    cost = pl.CostEstimate(
        flops=2 * M * N * K,
        transcendentals=(M * N) if apply_gelu else 0,
        bytes_accessed=int(
            (M * K) * (N // tn) * in_size
            + (K * N) * (M // tm_b) * in_size
            + N * 4
            + M * N * out_size
        ),
    )
    kernel = functools.partial(_linear_tiled_k_kernel, apply_gelu=apply_gelu)
    return pl.pallas_call(
        kernel,
        out_shape=jax.ShapeDtypeStruct((M, N), in_dtype),
        grid_spec=pltpu.PrefetchScalarGridSpec(
            num_scalar_prefetch=0,
            grid=grid,
            in_specs=[
                pl.BlockSpec((tm_b, tk_b), lambda i, j, k: (i, k)),  # x tile
                pl.BlockSpec((tk_b, tn), lambda i, j, k: (k, j)),    # W tile
                pl.BlockSpec((1, tn), lambda i, j, k: (0, j)),       # bias
            ],
            out_specs=pl.BlockSpec((tm_b, tn), lambda i, j, k: (i, j)),
            scratch_shapes=[pltpu.VMEM((tm_b, tn), jnp.float32)],
        ),
        compiler_params=pltpu.CompilerParams(
            dimension_semantics=("parallel", "parallel", "arbitrary"),
            vmem_limit_bytes=int(budget),
        ),
        cost_estimate=cost,
    )(x2d, w, b2d)


# ---------------------------------------------------------------------------
# MLP wrapper (mirrors MLP.forward): c_fc -> GELU(tanh) -> c_proj
# ---------------------------------------------------------------------------
def init_params(key, n_embd):
    k1, k2, k3, k4 = jax.random.split(key, 4)
    h = 4 * n_embd
    return {
        "w_fc": 0.02 * jax.random.normal(k1, (n_embd, h), jnp.float32),
        "b_fc": 0.01 * jax.random.normal(k2, (h,), jnp.float32),
        "w_proj": 0.02 * jax.random.normal(k3, (h, n_embd), jnp.float32),
        "b_proj": 0.01 * jax.random.normal(k4, (n_embd,), jnp.float32),
    }


def mlp(x, params, *, compute_dtype=None):
    """x: (B, T, C).  If compute_dtype=jnp.bfloat16, matmul operands are fed to
    the MXU in bf16 (f32 accumulation in-kernel); bias + GELU math stays f32."""
    B, T, C = x.shape
    x2d = x.reshape(B * T, C)
    w_fc, w_proj = params["w_fc"], params["w_proj"]
    if compute_dtype is not None:
        x2d = x2d.astype(compute_dtype)
        w_fc = w_fc.astype(compute_dtype)
        w_proj = w_proj.astype(compute_dtype)

    h = linear(x2d, w_fc, params["b_fc"], apply_gelu=True)        # (B*T, 4C), GELU fused
    out = linear(h, w_proj, params["b_proj"], apply_gelu=False)   # (B*T, C)
    return out.reshape(B, T, C).astype(x.dtype)


# ---------------------------------------------------------------------------
# Pure-JAX reference for correctness check
# ---------------------------------------------------------------------------
def reference(x, params):
    h = x @ params["w_fc"] + params["b_fc"]
    h = 0.5 * h * (1.0 + jnp.tanh(_GELU_C * (h + 0.044715 * h ** 3)))
    return h @ params["w_proj"] + params["b_proj"]


if __name__ == "__main__":
    # Small, shape-consistent config: batch=2, seq=8, n_embd=32 (hidden=128).
    B, T, C = 2, 8, 32
    key = jax.random.PRNGKey(0)
    kx, kp = jax.random.split(key)
    x = jax.random.normal(kx, (B, T, C), jnp.float32)
    params = init_params(kp, C)

    ref = reference(x, params)

    # f32 path: strict correctness check vs pure-JAX reference.
    out = jax.block_until_ready(mlp(x, params))
    assert out.shape == (B, T, C)
    assert jnp.allclose(out, ref, atol=1e-4, rtol=1e-4), "f32 mismatch vs reference"

    # bf16-operand path (f32 accumulation): tolerance check vs f32 reference.
    out_bf16 = jax.block_until_ready(mlp(x, params, compute_dtype=jnp.bfloat16))
    assert out_bf16.shape == (B, T, C)
    assert bool(jnp.all(jnp.isfinite(out_bf16)))
    assert jnp.allclose(out_bf16, ref, atol=5e-3, rtol=5e-2), "bf16 mismatch vs reference"

    print("KERNEL_OK")
</pallas_src>

<mosaic_0001>
module attributes {stable_mosaic.version = 11 : i64} {
  func.func @_linear_fullk_kernel(%arg0: i32, %arg1: i32, %arg2: memref<8x32xf32, #tpu.memory_space<vmem>>, %arg3: memref<32x128xf32, #tpu.memory_space<vmem>>, %arg4: memref<1x128xf32, #tpu.memory_space<vmem>>, %arg5: memref<8x128xf32, #tpu.memory_space<vmem>>) attributes {dimension_semantics = [#tpu.dimension_semantics<parallel>, #tpu.dimension_semantics<parallel>], iteration_bounds = array<i64: 1, 2>, scalar_prefetch = 0 : i64, scratch_operands = 0 : i64, tpu.core_type = #tpu.core_type<tc>, window_params = [{transform_indices = @transform_0, window_bounds = array<i64: 8, 32>}, {transform_indices = @transform_1, window_bounds = array<i64: 32, 128>}, {transform_indices = @transform_2, window_bounds = array<i64: 1, 128>}, {transform_indices = @transform_3, window_bounds = array<i64: 8, 128>}]} {
    %c0 = arith.constant 0 : index
    %c0_0 = arith.constant 0 : index
    %0 = vector.load %arg2[%c0, %c0_0] : memref<8x32xf32, #tpu.memory_space<vmem>>, vector<8x32xf32>
    %c0_1 = arith.constant 0 : index
    %c0_2 = arith.constant 0 : index
    %1 = vector.load %arg3[%c0_1, %c0_2] : memref<32x128xf32, #tpu.memory_space<vmem>>, vector<32x128xf32>
    %cst = arith.constant dense<0.000000e+00> : vector<8x128xf32>
    %2 = tpu.matmul %0, %1, %cst {dimension_numbers = #tpu.dot_dimension_numbers<[1], [0], [0], [1], [0, 0, 1, 1], [], []>} : vector<8x32xf32>, vector<32x128xf32>, vector<8x128xf32> -> vector<8x128xf32>
    %c0_3 = arith.constant 0 : index
    %c0_4 = arith.constant 0 : index
    %3 = vector.load %arg4[%c0_3, %c0_4] : memref<1x128xf32, #tpu.memory_space<vmem>>, vector<1x128xf32>
    %4 = vector.broadcast %3 : vector<1x128xf32> to vector<8x128xf32>
    %5 = arith.addf %2, %4 : vector<8x128xf32>
    %cst_5 = arith.constant 5.000000e-01 : f32
    %6 = vector.broadcast %cst_5 : f32 to vector<8x128xf32>
    %7 = arith.mulf %6, %5 : vector<8x128xf32>
    %cst_6 = arith.constant 4.471500e-02 : f32
    %8 = vector.broadcast %cst_6 : f32 to vector<8x128xf32>
    %9 = arith.mulf %8, %5 : vector<8x128xf32>
    %10 = arith.mulf %9, %5 : vector<8x128xf32>
    %11 = arith.mulf %10, %5 : vector<8x128xf32>
    %12 = arith.addf %5, %11 : vector<8x128xf32>
    %cst_7 = arith.constant 0.797884583 : f32
    %13 = vector.broadcast %cst_7 : f32 to vector<8x128xf32>
    %14 = arith.mulf %13, %12 : vector<8x128xf32>
    %15 = math.tanh %14 : vector<8x128xf32>
    %cst_8 = arith.constant 1.000000e+00 : f32
    %16 = vector.broadcast %cst_8 : f32 to vector<8x128xf32>
    %17 = arith.addf %16, %15 : vector<8x128xf32>
    %18 = arith.mulf %7, %17 : vector<8x128xf32>
    %c0_9 = arith.constant 0 : index
    %c0_10 = arith.constant 0 : index
    %19 = vector.load %arg5[%c0_9, %c0_10] : memref<8x128xf32, #tpu.memory_space<vmem>>, vector<8x128xf32>
    tpu.vector_store %arg5[%c0_9, %c0_10], %18 {strides = array<i32>} : memref<8x128xf32, #tpu.memory_space<vmem>>, vector<8x128xf32>,
    return
  }
  func.func @transform_0(%arg0: i32, %arg1: i32) -> (i32, i32) {
    %c0_i32 = arith.constant 0 : i32
    %c0_i32_0 = arith.constant 0 : i32
    return %arg1, %c0_i32 : i32, i32
  }
  func.func @transform_1(%arg0: i32, %arg1: i32) -> (i32, i32) {
    %c0_i32 = arith.constant 0 : i32
    %c0_i32_0 = arith.constant 0 : i32
    return %c0_i32, %arg0 : i32, i32
  }
  func.func @transform_2(%arg0: i32, %arg1: i32) -> (i32, i32) {
    %c0_i32 = arith.constant 0 : i32
    %c0_i32_0 = arith.constant 0 : i32
    return %c0_i32, %arg0 : i32, i32
  }
  func.func @transform_3(%arg0: i32, %arg1: i32) -> (i32, i32) {
    %c0_i32 = arith.constant 0 : i32
    return %arg1, %arg0 : i32, i32
  }
}

</mosaic_0001>

<llo_original>
// kernel: tpu_custom_call.1
$region0: #{tpu_custom_call.1}
  #allocation0 [shape = 'u32[]', space=smem, size = 0x4, offset = 0x4, fixed_abs, tag = 'smem constant byte address 0x4 - core index']
  #allocation1 [shape = 'u32[72,128]{1,0:T(1,128)}', space=vmem, size = 0x9000, scoped, tag = 'internal scratch']
  %s0 = inlined_call_operand.hbm [shape: f32[16,32], index: 0, kind: input, shape index: {}]
  %s1 = inlined_call_operand.hbm [shape: f32[32,128], index: 1, kind: input, shape index: {}]
  %s2 = inlined_call_operand.vmem [shape: f32[1,128], index: 2, kind: input, shape index: {}]
  %s3 = inlined_call_operand.hbm [shape: f32[16,128], index: 3, kind: output, shape index: {}]
  %s4 = sld [smem:[#allocation0]]
  $region53: #{tpu_custom_call.1} parent=0
    _
  %s6 = ssub.s32 1, %s4
  %s7 = scalar_select 0, %s6, %s4
  $region1: #{tpu_custom_call.1} parent=0
    #allocation2 [shape = 'u8[8192]{0}', space=vmem, size = 0x2000, scoped, tag = 'input window, operand 0']
    #allocation3 [shape = 's32[2]{0}', space=sflag, size = 0x8, scoped, tag = 'scoped memory for tpu_custom_call.1']
    #allocation4 [shape = 's32[2]{0}', space=sflag, size = 0x8, scoped, tag = 'scoped memory for tpu_custom_call.1']
    #allocation5 [shape = 'u8[16384]{0}', space=vmem, size = 0x4000, scoped, tag = 'input window, operand 1, single buffered']
    #allocation6 [shape = 's32[1]{0}', space=sflag, size = 0x4, scoped, tag = 'scoped memory for tpu_custom_call.1']
    #allocation7 [shape = 'u8[8192]{0}', space=vmem, size = 0x2000, scoped, tag = 'output window, operand 0']
    %8 = vsyncpa [#allocation3], 0
    %s9 = scalar_lea.sflag [#allocation3], 1
    %10 = vsyncpa %s9, 0
    %11 = vsyncpa [#allocation6], 0
    %12 = vsyncpa [#allocation4], 0
    %s13 = scalar_lea.sflag [#allocation4], 1
    %14 = vsyncpa %s13, 0
    loop: start=0, step=1, limit=4
    $region2: #{tpu_custom_call.1} parent=1 // loop_pre_header
      _
    $region3: #{tpu_custom_call.1} parent=1 // loop_header
      %s16 = sphi 0, %s20
      %p17 = scmp.ge.s32.totalorder %s16, 4
      %s23 = sphi 0, %s35
      %s24 = sphi 0, %s31
      %s25 = sphi 0, %s23
      %s26 = sphi 0, %s24
      %s27 = sphi 0, %s25
      %s28 = sphi 0, %s26
      %s38 = sphi 0, %s40
      %s41 = sphi 0, %s38
      %s42 = sphi 0, %s41
      %s58 = sphi 0, %s42
      %s64 = sphi 0, %s66
      %s67 = sphi 0, %s64
      %s68 = sphi 0, %s67
      %s84 = sphi 0, %s68
      %s90 = sphi 0, %s92
      %s93 = sphi 0, %s90
      %s94 = sphi 0, %s93
      %s110 = sphi 0, %s94
      %s118 = sphi 0, %s120
      %s121 = sphi 0, %s118
      %s122 = sphi 0, %s121
      %s138 = sphi 0, %s122
    $region4: #{tpu_custom_call.1} parent=1 // loop_header_branch
      %19 = sbr.rel (%p17) target = $region8
    $region5: #{tpu_custom_call.1} parent=1 // loop_body
      %s21 = ssub.s32 %s16, 1
      %s22 = ssub.s32 %s16, 2
      %s29 = sadd.s32 1, %s24
      %p30 = scmp.ge.s32.totalorder %s29, 2
      %s31 = scalar_select %p30, 0, %s29
      %s32 = sadd.s32 1, %s23
      %s33 = scalar_select %p30, %s32, %s23
      %p34 = scmp.ge.s32.totalorder %s33, 1
      %s35 = scalar_select %p34, 0, %s33
      %s36 = ssub.s32 %s24, %s31
      %p37 = scmp.eq.s32.totalorder %s36, 0
      %s39 = sadd.s32 %s38, 1
      %s40 = scalar_select %p37, %s38, %s39
      %p43 = pneg %p37
      %p44 = scmp.eq.s32.totalorder %s16, 1
      %p45 = por %p43, %p44
      %p46 = scmp.ne.s32.totalorder %s38, %s41
      %p47 = scmp.eq.s32.totalorder %s16, 0
      %p48 = por %p46, %p47
      %p49 = scmp.ne.s32.totalorder %s38, %s41
      %p50 = scmp.eq.s32.totalorder %s21, 1
      %p51 = por %p49, %p50
      %p52 = scmp.ne.s32.totalorder %s41, %s42
      %p53 = scmp.eq.s32.totalorder %s21, 0
      %p54 = por %p52, %p53
      %p55 = scmp.ne.s32.totalorder %s41, %s42
      %p56 = scmp.eq.s32.totalorder %s22, 1
      %p57 = por %p55, %p56
      %p59 = scmp.ne.s32.totalorder %s42, %s58
      %p60 = scmp.eq.s32.totalorder %s22, 0
      %p61 = por %p59, %p60
      %s62 = ssub.s32 %s23, %s35
      %p63 = scmp.eq.s32.totalorder %s62, 0
      %s65 = sadd.s32 %s64, 1
      %s66 = scalar_select %p63, %s64, %s65
      %p69 = pneg %p63
      %p70 = scmp.eq.s32.totalorder %s16, 1
      %p71 = por %p69, %p70
      %p72 = scmp.ne.s32.totalorder %s64, %s67
      %p73 = scmp.eq.s32.totalorder %s16, 0
      %p74 = por %p72, %p73
      %p75 = scmp.ne.s32.totalorder %s64, %s67
      %p76 = scmp.eq.s32.totalorder %s21, 1
      %p77 = por %p75, %p76
      %p78 = scmp.ne.s32.totalorder %s67, %s68
      %p79 = scmp.eq.s32.totalorder %s21, 0
      %p80 = por %p78, %p79
      %p81 = scmp.ne.s32.totalorder %s67, %s68
      %p82 = scmp.eq.s32.totalorder %s22, 1
      %p83 = por %p81, %p82
      %p85 = scmp.ne.s32.totalorder %s68, %s84
      %p86 = scmp.eq.s32.totalorder %s22, 0
      %p87 = por %p85, %p86
      %s88 = ssub.s32 %s23, %s35
      %p89 = scmp.eq.s32.totalorder %s88, 0
      %s91 = sadd.s32 %s90, 1
      %s92 = scalar_select %p89, %s90, %s91
      %p95 = pneg %p89
      %p96 = scmp.eq.s32.totalorder %s16, 1
      %p97 = por %p95, %p96
      %p98 = scmp.ne.s32.totalorder %s90, %s93
      %p99 = scmp.eq.s32.totalorder %s16, 0
      %p100 = por %p98, %p99
      %p101 = scmp.ne.s32.totalorder %s90, %s93
      %p102 = scmp.eq.s32.totalorder %s21, 1
      %p103 = por %p101, %p102
      %p104 = scmp.ne.s32.totalorder %s93, %s94
      %p105 = scmp.eq.s32.totalorder %s21, 0
      %p106 = por %p104, %p105
      %p107 = scmp.ne.s32.totalorder %s93, %s94
      %p108 = scmp.eq.s32.totalorder %s22, 1
      %p109 = por %p107, %p108
      %p111 = scmp.ne.s32.totalorder %s94, %s110
      %p112 = scmp.eq.s32.totalorder %s22, 0
      %p113 = por %p111, %p112
      %s114 = ssub.s32 %s24, %s31
      %s115 = ssub.s32 %s23, %s35
      %s116 = sor.u32 %s114, %s115
      %p117 = scmp.eq.s32.totalorder %s116, 0
      %s119 = sadd.s32 %s118, 1
      %s120 = scalar_select %p117, %s118, %s119
      %p123 = pneg %p117
      %p124 = scmp.eq.s32.totalorder %s16, 1
      %p125 = por %p123, %p124
      %p126 = scmp.ne.s32.totalorder %s118, %s121
      %p127 = scmp.eq.s32.totalorder %s16, 0
      %p128 = por %p126, %p127
      %p129 = scmp.ne.s32.totalorder %s118, %s121
      %p130 = scmp.eq.s32.totalorder %s21, 1
      %p131 = por %p129, %p130
      %p132 = scmp.ne.s32.totalorder %s121, %s122
      %p133 = scmp.eq.s32.totalorder %s21, 0
      %p134 = por %p132, %p133
      %p135 = scmp.ne.s32.totalorder %s121, %s122
      %p136 = scmp.eq.s32.totalorder %s22, 1
      %p137 = por %p135, %p136
      %p139 = scmp.ne.s32.totalorder %s122, %s138
      %p140 = scmp.eq.s32.totalorder %s22, 0
      %p141 = por %p139, %p140
      %p142 = scmp.le.s32.totalorder 1, %s16
      %p143 = scmp.lt.s32.totalorder %s16, 3
      %p144 = pnand %p142, %p143
      %p145 = pneg %p144
      // Predicated region
      $region9: #{tpu_custom_call.1} parent=5 // pred_check
        _
      $region10: #{tpu_custom_call.1} parent=5 // pred_check_branch
        %147 = sbr.rel (%p144) target = $region12
      $region11: #{tpu_custom_call.1} parent=5 // pred_region
        %s148 = ssub.s32 %s16, 1
        // Predicated region
        $region13: #{tpu_custom_call.1} parent=11 // pred_check
          %p149 = pneg %p80
        $region14: #{tpu_custom_call.1} parent=11 // pred_check_branch
          %151 = sbr.rel (%p149) target = $region16
        $region15: #{tpu_custom_call.1} parent=11 // pred_region
          %153 = vsyncadd [#allocation6], 0
          %s154 = smul.addr %s25, 8
          %s155 = scalar_lea.hbm %s1, %s154
          %s156 = sshll.u32 %s155, 4
          %s157 = int_to_ptr.hbm [resolvable:$true] %s156
          %s158 = sshll.u32 [#allocation5], 4
          %s159 = int_to_ptr.vmem [resolvable:$true] %s158
          %164 = dma.hbm_to_vmem [thread:$0]  %s157, 512, %s159, [#allocation6], 128, 128, 8
        $region16: #{tpu_custom_call.1} parent=11 // pred_fallthru
          _
        // Predicated region
        $region17: #{tpu_custom_call.1} parent=11 // pred_check
          %p165 = pneg %p106
        $region18: #{tpu_custom_call.1} parent=11 // pred_check_branch
          %167 = sbr.rel (%p165) target = $region20
        $region19: #{tpu_custom_call.1} parent=11 // pred_region
          %p168 = scmp.lt.s32.totalorder %s25, 0
          %s169 = scalar_select %p168, %s25, 0
          %s170 = scalar_lea.vmem %s2, %s169
        $region20: #{tpu_custom_call.1} parent=11 // pred_fallthru
          _
      $region12: #{tpu_custom_call.1} parent=5 // pred_fallthru
        _
      %p171 = scmp.lt.s32.totalorder %s16, 2
      // Predicated region
      $region21: #{tpu_custom_call.1} parent=5 // pred_check
        %p172 = pneg %p171
      $region22: #{tpu_custom_call.1} parent=5 // pred_check_branch
        %174 = sbr.rel (%p172) target = $region24
      $region23: #{tpu_custom_call.1} parent=5 // pred_region
        // Predicated region
        $region25: #{tpu_custom_call.1} parent=23 // pred_check
          %p175 = pneg %p48
        $region26: #{tpu_custom_call.1} parent=23 // pred_check_branch
          %177 = sbr.rel (%p175) target = $region28
        $region27: #{tpu_custom_call.1} parent=23 // pred_region
          %s178 = sand.u32 %s38, 1
          %s179 = scalar_lea.sflag [#allocation3], %s178
          %s180 = sand.u32 %s38, 1
          %s181 = smul.addr %s180, 8
          %s182 = scalar_lea.vmem [#allocation2], %s181
          %184 = vsyncadd %s179, 0
          %s185 = smul.addr %s24, 8
          %s186 = scalar_lea.hbm %s0, %s185
          %s188 = sshll.u32 %s186, 4
          %s189 = int_to_ptr.hbm [resolvable:$true] %s188
          %s190 = sshll.u32 %s182, 4
          %s191 = int_to_ptr.vmem [resolvable:$true] %s190
          %193 = dma.hbm_to_vmem [thread:$0]  %s189, 128, %s191, %s179
        $region28: #{tpu_custom_call.1} parent=23 // pred_fallthru
          _
      $region24: #{tpu_custom_call.1} parent=5 // pred_fallthru
        _
      %p194 = scmp.le.s32.totalorder 1, %s16
      %p195 = scmp.lt.s32.totalorder %s16, 3
      %p196 = pnand %p194, %p195
      %p197 = pneg %p196
      // Predicated region
      $region29: #{tpu_custom_call.1} parent=5 // pred_check
        _
      $region30: #{tpu_custom_call.1} parent=5 // pred_check_branch
        %199 = sbr.rel (%p196) target = $region32
      $region31: #{tpu_custom_call.1} parent=5 // pred_region
        %s200 = ssub.s32 %s16, 1
        %s201 = sand.u32 %s41, 1
        %s202 = scalar_lea.sflag [#allocation3], %s201
        %s203 = sand.u32 %s41, 1
        %s204 = smul.addr %s203, 8
        %s205 = scalar_lea.vmem [#allocation2], %s204
        // Predicated region
        $region33: #{tpu_custom_call.1} parent=31 // pred_check
          %p206 = pneg %p54
        $region34: #{tpu_custom_call.1} parent=31 // pred_check_branch
          %208 = sbr.rel (%p206) target = $region36
        $region35: #{tpu_custom_call.1} parent=31 // pred_region
          %210 = dma.done %s202, 128
        $region36: #{tpu_custom_call.1} parent=31 // pred_fallthru
          _
        // Predicated region
        $region37: #{tpu_custom_call.1} parent=31 // pred_check
          %p211 = pneg %p80
        $region38: #{tpu_custom_call.1} parent=31 // pred_check_branch
          %213 = sbr.rel (%p211) target = $region40
        $region39: #{tpu_custom_call.1} parent=31 // pred_region
          %215 = dma.done [#allocation6], 512
        $region40: #{tpu_custom_call.1} parent=31 // pred_fallthru
          _
        %s216 = sand.u32 %s41, 1
        %s217 = scalar_lea.sflag [#allocation3], %s216
        %s218 = sand.u32 %s41, 1
        %s219 = smul.addr %s218, 8
        %s220 = scalar_lea.vmem [#allocation2], %s219
        %p221 = pneg %p54
        %p222 = pneg %p51
        %p223 = pneg %p80
        %p224 = pneg %p77
        %p225 = scmp.lt.s32.totalorder %s25, 0
        %s226 = scalar_select %p225, %s25, 0
        %s227 = scalar_lea.vmem %s2, %s226
        %p228 = pneg %p106
        %p229 = pneg %p103
        %p230 = pneg %p134
        %p231 = pneg %p131
        %s232 = sand.u32 %s121, 1
        %s233 = scalar_lea.sflag [#allocation4], %s232
        %s234 = sand.u32 %s121, 1
        %s235 = smul.addr %s234, 8
        %s236 = scalar_lea.vmem [#allocation7], %s235
        %p237 = scmp.lt.s32.totalorder %s25, 0
        %s238 = scalar_select %p237, %s25, 0
        %s239 = scalar_lea.vmem %s2, %s238
        %v240 = vld [vmem:[%s205] sm:$0xff]
        %v241 = vld [vmem:[#allocation5] sm:$0xff]
        %v242 = vld [vmem:[#allocation5 + $0x8] sm:$0xff]
        %v243 = vld [vmem:[#allocation5 + $0x10] sm:$0xff]
        %v244 = vld [vmem:[#allocation5 + $0x18] sm:$0xff]
        %v245 = vld [vmem:[%s239] sm:$0x1]
        %v247 = vperm.slane %v245, 0
        %vm249 = vcmask 261120
        %v251 = vsel %vm249, %v240, 0
        %253 = vmatpush.msra.mxu0 0.0
        %254 = vmatpush.msra.mxu0 0.0
        %255 = vmatpush.msra.mxu0 0.0
        %256 = vmatpush.msra.mxu0 0.0
        %257 = vmatpush.msra.mxu0 0.0
        %258 = vmatpush.msra.mxu0 0.0
        %259 = vmatpush.msra.mxu0 0.0
        %260 = vmatpush.msra.mxu0 0.0
        %261 = vmatpush.msra.mxu0 0.0
        %262 = vmatpush.msra.mxu0 0.0
        %263 = vmatpush.msra.mxu0 0.0
        %264 = vmatpush.msra.mxu0 0.0
        %265 = vmatpush.msra.mxu0 %v244
        %266 = vmatpush.msra.mxu0 %v243
        %267 = vmatpush.msra.mxu0 %v242
        %268 = vmatpush.msra.mxu0 %v241
        %269 = vmatmul.f32.gmra.mxu0 %v251
        %v270 = vpop.f32.mrf.mxu0
        %v271 = vadd.f32 %v247, %v270
        %272 = vdwg.mxu0
        %v273 = vmul.f32 %v271, 0.5
        %v274 = vmul.f32 %v271, 0.044715
        %v275 = vmul.f32 %v274, %v271
        %v276 = vmul.f32 %v275, %v271
        %v277 = vadd.f32 %v271, %v276
        %v278 = vmul.f32 %v277, 0.7978846
        %v279 = vtanh.pop %v278
        %v280 = vadd.f32 %v279, 1.0
        %v281 = vmul.f32 %v273, %v280
        %282 = vst [vmem:[%s236] sm:$0xff] %v281
        %s283 = sand.u32 %s121, 1
        %s284 = scalar_lea.sflag [#allocation4], %s283
        %s285 = sand.u32 %s121, 1
        %s286 = smul.addr %s285, 8
        %s287 = scalar_lea.vmem [#allocation7], %s286
        // Predicated region
        $region41: #{tpu_custom_call.1} parent=31 // pred_check
          %p288 = pneg %p131
        $region42: #{tpu_custom_call.1} parent=31 // pred_check_branch
          %290 = sbr.rel (%p288) target = $region44
        $region43: #{tpu_custom_call.1} parent=31 // pred_region
          %292 = vsyncadd %s284, 0
          %s293 = sadd.s32 %s25, %s26
          %s294 = smul.addr %s293, 8
          %s295 = scalar_lea.hbm %s3, %s294
          %s297 = sshll.u32 %s287, 4
          %s298 = int_to_ptr.vmem [resolvable:$true] %s297
          %s299 = sshll.u32 %s295, 4
          %s300 = int_to_ptr.hbm [resolvable:$true] %s299
          %302 = dma.vmem_to_hbm [thread:$0]  %s298, 128, %s300, %s284
        $region44: #{tpu_custom_call.1} parent=31 // pred_fallthru
          _
      $region32: #{tpu_custom_call.1} parent=5 // pred_fallthru
        _
      %p303 = scmp.le.s32.totalorder 2, %s16
      // Predicated region
      $region45: #{tpu_custom_call.1} parent=5 // pred_check
        %p304 = pneg %p303
      $region46: #{tpu_custom_call.1} parent=5 // pred_check_branch
        %306 = sbr.rel (%p304) target = $region48
      $region47: #{tpu_custom_call.1} parent=5 // pred_region
        %s307 = ssub.s32 %s16, 2
        // Predicated region
        $region49: #{tpu_custom_call.1} parent=47 // pred_check
          %p308 = pneg %p137
        $region50: #{tpu_custom_call.1} parent=47 // pred_check_branch
          %310 = sbr.rel (%p308) target = $region52
        $region51: #{tpu_custom_call.1} parent=47 // pred_region
          %s311 = sand.u32 %s122, 1
          %s312 = scalar_lea.sflag [#allocation4], %s311
          %s313 = sand.u32 %s122, 1
          %s314 = smul.addr %s313, 8
          %s315 = scalar_lea.vmem [#allocation7], %s314
          %317 = dma.done %s312, 128
        $region52: #{tpu_custom_call.1} parent=47 // pred_fallthru
          _
      $region48: #{tpu_custom_call.1} parent=5 // pred_fallthru
        _
    $region6: #{tpu_custom_call.1} parent=1 // loop_footer
      %s20 = sadd.s32 1, %s16
    $region7: #{tpu_custom_call.1} parent=1 // loop_footer_branch
      %15 = sbr.rel target = $region3
    $region8: #{tpu_custom_call.1} parent=1 // loop_exit
      _
    %318 = vsyncpa [#allocation3], 1
    %s319 = scalar_lea.sflag [#allocation3], 1
    %320 = vsyncpa %s319, 1
    %321 = vsyncpa [#allocation6], 1
    %322 = vsyncpa [#allocation4], 1
    %s323 = scalar_lea.sflag [#allocation4], 1
    %324 = vsyncpa %s323, 1

</llo_original>
